<compile_context>
chip_gen: v5e
topology: v5e:2x2
jax: 0.10.0
libtpu: 0.0.40
codegen_flags: <defaults>
</compile_context>

<pallas_src>
import jax
import jax.numpy as jnp
from jax.experimental import pallas as pl
from jax.experimental.pallas import tpu as pltpu

_SUBLANES = 8
_LANES = 128
_MAX_BLOCK_BYTES_CAP = 16 * 1024 * 1024   # hard ceiling per VMEM block buffer
_FALLBACK_VMEM_BYTES = 64 * 1024 * 1024   # v7x per-TC physical (smallest gen)


def _identity_kernel(x_ref, o_ref):
    # Pure pass-through: copy the current VMEM tile.
    o_ref[...] = x_ref[...]


def _vmem_budget_bytes() -> int:
    """~3/4 of this chip's physical VMEM, with a conservative fallback."""
    try:
        cap = int(pltpu.get_tpu_info().vmem_capacity_bytes)
        if cap <= 0:
            raise ValueError("bad vmem capacity")
    except Exception:
        cap = _FALLBACK_VMEM_BYTES
    return (3 * cap) // 4


def _block_rows(rows: int, cols: int, itemsize: int, max_block_bytes: int) -> int:
    """Largest multiple-of-8 row count keeping one block <= max_block_bytes,
    while keeping the grid >= 2 steps when possible (v7x megacore)."""
    r = (max_block_bytes // max(cols * itemsize, 1)) // _SUBLANES * _SUBLANES
    r = max(_SUBLANES, r)
    r = min(rows, r)
    # Keep at least 2 grid steps when there is enough work, so the "parallel"
    # axis can be sharded across v7x's two TensorCores (neutral on v5e/v6e).
    if rows >= 2 * _SUBLANES and pl.cdiv(rows, r) < 2:
        half = pl.cdiv(rows, 2)
        half = ((half + _SUBLANES - 1) // _SUBLANES) * _SUBLANES
        r = min(rows, max(_SUBLANES, half))
    return r


def _choose_cols(n: int) -> int:
    """Widest lane-dense column count (multiple of 128) dividing n evenly."""
    for c in (8192, 4096, 2048, 1024, 512, 256, 128):
        if n % c == 0:
            return c
    return _LANES  # unreachable when n % 128 == 0


def _identity_2d(x2d: jax.Array) -> jax.Array:
    rows, cols = x2d.shape
    itemsize = jnp.dtype(x2d.dtype).itemsize
    budget = _vmem_budget_bytes()
    # in + out, each double-buffered => ~4x block bytes live, plus headroom.
    block_bytes = max(_SUBLANES * _LANES * itemsize,
                      min(_MAX_BLOCK_BYTES_CAP, budget // 6))
    brows = _block_rows(rows, cols, itemsize, block_bytes)
    grid = (pl.cdiv(rows, brows),)
    hbm_bytes = 2 * rows * cols * itemsize  # 1 read + 1 write
    return pl.pallas_call(
        _identity_kernel,
        out_shape=jax.ShapeDtypeStruct((rows, cols), x2d.dtype),
        grid_spec=pltpu.PrefetchScalarGridSpec(
            num_scalar_prefetch=0,
            grid=grid,
            in_specs=[pl.BlockSpec((brows, cols), lambda i: (i, 0))],
            out_specs=pl.BlockSpec((brows, cols), lambda i: (i, 0)),
        ),
        compiler_params=pltpu.CompilerParams(
            dimension_semantics=("parallel",),
            vmem_limit_bytes=int(budget),
        ),
        cost_estimate=pl.CostEstimate(
            flops=0, transcendentals=0, bytes_accessed=int(hbm_bytes)),
    )(x2d)


def identity(x: jax.Array) -> jax.Array:
    """nn.Identity forward: a true no-op. Returns x unchanged, zero cost."""
    return x


def identity_pallas(x: jax.Array) -> jax.Array:
    """Identity expressed as a Pallas streaming copy (for exercising the
    Pallas path only — semantically identical to identity())."""
    orig_shape = x.shape
    n = x.size
    if n == 0 or n % _LANES != 0:
        # A padded round trip would cost ~3x the traffic of the copy itself;
        # honor the Identity contract directly for awkward / empty sizes.
        return x
    cols = _choose_cols(n)
    rows = n // cols
    out = _identity_2d(x.reshape(rows, cols))
    return out.reshape(orig_shape)


if __name__ == "__main__":
    key = jax.random.PRNGKey(0)
    # Small NCHW input consistent with a CNN feature map.
    x = jax.random.normal(key, (2, 4, 16, 16), dtype=jnp.float32)

    # Module-faithful forward: a true no-op (the real optimum for Identity).
    y = identity(x)
    assert y is x

    # Explicitly exercise the Pallas copy path once.
    y_k = identity_pallas(x)
    jax.block_until_ready(y_k)

    assert y_k.shape == x.shape, (y_k.shape, x.shape)
    assert y_k.dtype == x.dtype, (y_k.dtype, x.dtype)
    assert bool(jnp.all(y_k == x)), "identity kernel did not reproduce input"

    print("KERNEL_OK")
</pallas_src>

<mosaic_0001>
module attributes {stable_mosaic.version = 11 : i64} {
  func.func @_identity_kernel(%arg0: i32, %arg1: memref<1x2048xf32, #tpu.memory_space<vmem>>, %arg2: memref<1x2048xf32, #tpu.memory_space<vmem>>) attributes {dimension_semantics = [#tpu.dimension_semantics<parallel>], iteration_bounds = array<i64: 1>, scalar_prefetch = 0 : i64, scratch_operands = 0 : i64, tpu.core_type = #tpu.core_type<tc>, window_params = [{transform_indices = @transform_0, window_bounds = array<i64: 1, 2048>}, {transform_indices = @transform_1, window_bounds = array<i64: 1, 2048>}]} {
    %c0 = arith.constant 0 : index
    %c0_0 = arith.constant 0 : index
    %0 = vector.load %arg1[%c0, %c0_0] : memref<1x2048xf32, #tpu.memory_space<vmem>>, vector<1x2048xf32>
    %c0_1 = arith.constant 0 : index
    %c0_2 = arith.constant 0 : index
    %1 = vector.load %arg2[%c0_1, %c0_2] : memref<1x2048xf32, #tpu.memory_space<vmem>>, vector<1x2048xf32>
    tpu.vector_store %arg2[%c0_1, %c0_2], %0 {strides = array<i32>} : memref<1x2048xf32, #tpu.memory_space<vmem>>, vector<1x2048xf32>,
    return
  }
  func.func @transform_0(%arg0: i32) -> (i32, i32) {
    %c0_i32 = arith.constant 0 : i32
    %c0_i32_0 = arith.constant 0 : i32
    return %arg0, %c0_i32 : i32, i32
  }
  func.func @transform_1(%arg0: i32) -> (i32, i32) {
    %c0_i32 = arith.constant 0 : i32
    %c0_i32_0 = arith.constant 0 : i32
    return %arg0, %c0_i32 : i32, i32
  }
}

</mosaic_0001>

<llo_original>
// kernel: tpu_custom_call.1
$region0: #{tpu_custom_call.1}
  #allocation0 [shape = 'u32[]', space=smem, size = 0x4, offset = 0x4, fixed_abs, tag = 'smem constant byte address 0x4 - core index']
  #allocation1 [shape = 'u32[72,128]{1,0:T(1,128)}', space=vmem, size = 0x9000, scoped, tag = 'internal scratch']
  %s0 = inlined_call_operand.hbm [shape: f32[1,2048], index: 0, kind: input, shape index: {}]
  %s1 = inlined_call_operand.hbm [shape: f32[1,2048], index: 1, kind: output, shape index: {}]
  %s2 = sld [smem:[#allocation0]]
  $region18: #{tpu_custom_call.1} parent=0
    _
  %s4 = ssub.s32 1, %s2
  %s5 = scalar_select 0, %s4, %s2
  $region1: #{tpu_custom_call.1} parent=0
    #allocation2 [shape = 'u8[8192]{0}', space=vmem, size = 0x2000, scoped, tag = 'input window, operand 0, single buffered']
    #allocation3 [shape = 's32[1]{0}', space=sflag, size = 0x4, scoped, tag = 'scoped memory for tpu_custom_call.1']
    #allocation4 [shape = 's32[1]{0}', space=sflag, size = 0x4, scoped, tag = 'scoped memory for tpu_custom_call.1']
    #allocation5 [shape = 'u8[8192]{0}', space=vmem, size = 0x2000, scoped, tag = 'output window, operand 0, single buffered']
    %6 = vsyncpa [#allocation3], 0
    %7 = vsyncpa [#allocation4], 0
    // Predicated region
    $region2: #{tpu_custom_call.1} parent=1 // pred_check
      _
    $region3: #{tpu_custom_call.1} parent=1 // pred_check_branch
      %9 = sbr.rel (0) target = $region5
    $region4: #{tpu_custom_call.1} parent=1 // pred_region
      %11 = vsyncadd [#allocation3], 0
      %s13 = sshll.u32 %s0, 4
      %s14 = int_to_ptr.hbm [resolvable:$true] %s13
      %s15 = sshll.u32 [#allocation2], 4
      %s16 = int_to_ptr.vmem [resolvable:$true] %s15
      %18 = dma.hbm_to_vmem [thread:$0]  %s14, 256, %s16, [#allocation3]
    $region5: #{tpu_custom_call.1} parent=1 // pred_fallthru
      _
    // Predicated region
    $region6: #{tpu_custom_call.1} parent=1 // pred_check
      _
    $region7: #{tpu_custom_call.1} parent=1 // pred_check_branch
      %20 = sbr.rel (0) target = $region9
    $region8: #{tpu_custom_call.1} parent=1 // pred_region
      %22 = dma.done [#allocation3], 256
    $region9: #{tpu_custom_call.1} parent=1 // pred_fallthru
      _
    %v23 = vld [vmem:[#allocation2] sm:$0xff]
    %v24 = vld [vmem:[#allocation2 + $0x8] sm:$0xff]
    %25 = vst [vmem:[#allocation5] sm:$0xff] %v23
    %26 = vst [vmem:[#allocation5 + $0x8] sm:$0xff] %v24
    // Predicated region
    $region10: #{tpu_custom_call.1} parent=1 // pred_check
      _
    $region11: #{tpu_custom_call.1} parent=1 // pred_check_branch
      %28 = sbr.rel (0) target = $region13
    $region12: #{tpu_custom_call.1} parent=1 // pred_region
      %30 = vsyncadd [#allocation4], 0
      %s32 = sshll.u32 [#allocation5], 4
      %s33 = int_to_ptr.vmem [resolvable:$true] %s32
      %s34 = sshll.u32 %s1, 4
      %s35 = int_to_ptr.hbm [resolvable:$true] %s34
      %37 = dma.vmem_to_hbm [thread:$0]  %s33, 256, %s35, [#allocation4]
    $region13: #{tpu_custom_call.1} parent=1 // pred_fallthru
      _
    // Predicated region
    $region14: #{tpu_custom_call.1} parent=1 // pred_check
      _
    $region15: #{tpu_custom_call.1} parent=1 // pred_check_branch
      %39 = sbr.rel (0) target = $region17
    $region16: #{tpu_custom_call.1} parent=1 // pred_region
      %41 = dma.done [#allocation4], 256
    $region17: #{tpu_custom_call.1} parent=1 // pred_fallthru
      _
    %42 = vsyncpa [#allocation3], 1
    %43 = vsyncpa [#allocation4], 1

</llo_original>
